<compile_context>
chip_gen: v7x
topology: tpu7x:2x2x1
jax: 0.10.0
libtpu: 0.0.40
codegen_flags: <defaults>
</compile_context>

<pallas_src>
import jax
import jax.numpy as jnp
from jax.experimental import pallas as pl
from jax.experimental.pallas import tpu as pltpu

_LANES = 128
_SUBLANES = 8


def _head_kernel(x_ref, w1_ref, b1_ref, w2_ref, b2_ref, o_ref):
    # In-kernel cast of the streamed activations to the MXU dtype (no-op when
    # the producer already hands us that dtype).
    x = x_ref[...].astype(w1_ref.dtype)
    # dense (2H -> H) on the MXU, f32 accumulate.
    h = jnp.dot(x, w1_ref[...], preferred_element_type=jnp.float32)
    # bias + tanh in f32 (VPU/EUP); safe on v5e which has no bf16 elementwise path.
    h = jnp.tanh(h + b1_ref[...])
    # out_proj (H -> 128 lane-padded). MXU cost ~= H -> 2, but the store /
    # writeback is a full-width unmasked vst (lane-dense output).
    y = jnp.dot(h.astype(w2_ref.dtype), w2_ref[...],
                preferred_element_type=jnp.float32)
    o_ref[...] = (y + b2_ref[...]).astype(o_ref.dtype)


def _resident_spec(shape):
    """Constant (VMEM-resident) block: single-buffered if supported."""
    buffered = getattr(pl, "Buffered", None)
    if buffered is not None:
        try:
            return pl.BlockSpec(shape, lambda i: (0, 0),
                                pipeline_mode=buffered(1))
        except TypeError:
            pass  # older jax without pipeline_mode kwarg
    return pl.BlockSpec(shape, lambda i: (0, 0))


def roberta_classification_head(x, w1, b1, w2, b2, *, block_rows=1024,
                                compute_dtype=jnp.bfloat16, out_dtype=None,
                                vmem_limit_bytes=None):
    """x: (N, H). Returns logits of shape (N // 2, 2).

    w1: (2H, H)  -- dense weight, pre-transposed (in, out)
    b1: (H,) or (1, H)
    w2: (H, 2)   -- out_proj weight, pre-transposed (in, out)
    b2: (2,) or (1, 2)

    block_rows:    row tile (multiple of 256 recommended at production sizes).
    compute_dtype: dtype fed to the MXU (bfloat16 default -> native rate on
                   v6e/v7x). Accumulation / bias / tanh stay float32.
                   Pass jnp.float32 for a strict-f32 path (e.g. v5e tuning).
    out_dtype:     dtype of the lane-padded logits (default: compute_dtype).
    """
    n, hid = x.shape
    assert n % 2 == 0
    rows = n // 2
    in_feat = 2 * hid
    out_feat = w2.shape[1]                       # 2
    x2 = x.reshape(rows, in_feat)                # x.reshape(-1, x.size(-1) * 2)

    mxu_dtype = jnp.dtype(compute_dtype) if compute_dtype is not None else x2.dtype
    o_dtype = jnp.dtype(out_dtype) if out_dtype is not None else mxu_dtype

    # Weights are small (<= a few MB); cast them once in the wrapper so they sit
    # in VMEM at MXU width. The (large, streamed) activations are NOT cast here
    # -- that happens inside the kernel to avoid an extra HBM pass.
    w1 = w1.astype(mxu_dtype)
    w2 = w2.astype(mxu_dtype)
    b1 = b1.astype(jnp.float32).reshape(1, hid)
    b2 = b2.astype(jnp.float32).reshape(1, out_feat)

    # Lane-dense output: pad out_proj columns up to 128 lanes (do not grow past
    # 128 -- the second matmul is ~8% of FLOPs and wider padding only adds
    # writeback bytes).
    out_pad = max(_LANES, ((out_feat + _LANES - 1) // _LANES) * _LANES)
    w2p = jnp.zeros((hid, out_pad), mxu_dtype).at[:, :out_feat].set(w2)
    b2p = jnp.zeros((1, out_pad), jnp.float32).at[:, :out_feat].set(b2)

    # Row tile sizing (no wrapper-side padding; the last block is a masked
    # partial block handled by Pallas).
    tm = int(block_rows)
    if rows < 2 * tm:
        if rows >= 512:
            # Split into (at least) two tiles so both v7x TensorCores get work
            # under dimension_semantics=("parallel",).
            half = -(-rows // 2)
            tm = ((half + 255) // 256) * 256
        else:
            # Tiny inputs: one tile rounded to the sublane pack.
            tm = max(_SUBLANES,
                     ((min(rows, tm) + _SUBLANES - 1) // _SUBLANES) * _SUBLANES)

    grid = (pl.cdiv(rows, tm),)
    out_shape = jax.ShapeDtypeStruct((rows, out_pad), o_dtype)

    # Advisory cost estimate for the XLA scheduler.
    in_itemsize = jnp.dtype(x2.dtype).itemsize
    w_itemsize = jnp.dtype(mxu_dtype).itemsize
    out_itemsize = jnp.dtype(o_dtype).itemsize
    cost = pl.CostEstimate(
        flops=int(2 * rows * (in_feat * hid + hid * out_pad)),
        transcendentals=int(rows * hid),
        bytes_accessed=int(rows * in_feat * in_itemsize
                           + (w1.size + w2p.size) * w_itemsize
                           + (b1.size + b2p.size) * 4
                           + rows * out_pad * out_itemsize),
    )

    y = pl.pallas_call(
        _head_kernel,
        out_shape=out_shape,
        grid=grid,
        in_specs=[
            # streamed (double-buffered) row tiles of the activations
            pl.BlockSpec((tm, in_feat), lambda i: (i, 0)),
            # small weights / biases: VMEM-resident, single-buffered
            _resident_spec(w1.shape),
            _resident_spec(b1.shape),
            _resident_spec(w2p.shape),
            _resident_spec(b2p.shape),
        ],
        out_specs=pl.BlockSpec((tm, out_pad), lambda i: (i, 0)),
        compiler_params=pltpu.CompilerParams(
            dimension_semantics=("parallel",),   # shards row tiles across TCs on v7x
            vmem_limit_bytes=vmem_limit_bytes,
        ),
        cost_estimate=cost,
    )(x2, w1, b1, w2p, b2p)

    # Drop the lane padding; in a fused pipeline this slice folds into the
    # consumer (or hand the consumer the padded buffer directly).
    return y[:, :out_feat]


if __name__ == "__main__":
    # Toy config: encoder_embed_dim = 32, N = 8 hidden rows -> 4 examples.
    # (Production perf tuning should be done at H=768/1024 and large row counts.)
    H = 32
    N = 8  # must be even

    key = jax.random.PRNGKey(0)
    kx, kw1, kb1, kw2, kb2 = jax.random.split(key, 5)

    x = jax.random.normal(kx, (N, H), dtype=jnp.float32)

    # nn.Linear-shaped params, stored pre-transposed (in, out).
    w1 = jax.random.normal(kw1, (2 * H, H), dtype=jnp.float32) * 0.02   # dense
    b1 = jax.random.normal(kb1, (1, H), dtype=jnp.float32) * 0.02
    w2 = jax.random.normal(kw2, (H, 2), dtype=jnp.float32) * 0.02       # out_proj
    b2 = jax.random.normal(kb2, (1, 2), dtype=jnp.float32) * 0.02

    x2 = x.reshape(N // 2, 2 * H)
    ref = jnp.tanh(x2 @ w1 + b1) @ w2 + b2

    # Strict f32 path (tight tolerance).
    out_f32 = roberta_classification_head(x, w1, b1, w2, b2,
                                          compute_dtype=jnp.float32,
                                          out_dtype=jnp.float32)
    out_f32 = jax.block_until_ready(out_f32)
    assert out_f32.shape == (N // 2, 2)
    assert jnp.allclose(out_f32, ref, atol=1e-5, rtol=1e-5), \
        "mismatch vs reference (f32)"

    # Default bf16-MXU path (v6e/v7x production setting): f32 accumulate,
    # bf16 output, looser check.
    out_bf16 = roberta_classification_head(x, w1, b1, w2, b2)
    out_bf16 = jax.block_until_ready(out_bf16)
    assert out_bf16.shape == (N // 2, 2)
    assert jnp.allclose(out_bf16.astype(jnp.float32), ref,
                        atol=2e-2, rtol=2e-2), "mismatch vs reference (bf16)"

    print("KERNEL_OK")
</pallas_src>

<mosaic_0001>
module attributes {stable_mosaic.version = 11 : i64} {
  func.func @_head_kernel(%arg0: i32, %arg1: memref<8x64xf32, #tpu.memory_space<vmem>>, %arg2: memref<64x32xf32, #tpu.memory_space<vmem>>, %arg3: memref<1x32xf32, #tpu.memory_space<vmem>>, %arg4: memref<32x128xf32, #tpu.memory_space<vmem>>, %arg5: memref<1x128xf32, #tpu.memory_space<vmem>>, %arg6: memref<8x128xf32, #tpu.memory_space<vmem>>) attributes {dimension_semantics = [#tpu.dimension_semantics<parallel>], iteration_bounds = array<i64: 1>, scalar_prefetch = 0 : i64, scratch_operands = 0 : i64, tpu.core_type = #tpu.core_type<tc>, window_params = [{transform_indices = @transform_0, window_bounds = array<i64: 8, 64>}, {pipeline_mode = #tpu.pipeline_mode<synchronous>, transform_indices = @transform_1, window_bounds = array<i64: 64, 32>}, {pipeline_mode = #tpu.pipeline_mode<synchronous>, transform_indices = @transform_2, window_bounds = array<i64: 1, 32>}, {pipeline_mode = #tpu.pipeline_mode<synchronous>, transform_indices = @transform_3, window_bounds = array<i64: 32, 128>}, {pipeline_mode = #tpu.pipeline_mode<synchronous>, transform_indices = @transform_4, window_bounds = array<i64: 1, 128>}, {transform_indices = @transform_5, window_bounds = array<i64: 8, 128>}]} {
    %c0 = arith.constant 0 : index
    %c0_0 = arith.constant 0 : index
    %0 = vector.load %arg1[%c0, %c0_0] : memref<8x64xf32, #tpu.memory_space<vmem>>, vector<8x64xf32>
    %c0_1 = arith.constant 0 : index
    %c0_2 = arith.constant 0 : index
    %1 = vector.load %arg2[%c0_1, %c0_2] : memref<64x32xf32, #tpu.memory_space<vmem>>, vector<64x32xf32>
    %cst = arith.constant dense<0.000000e+00> : vector<8x32xf32>
    %2 = tpu.matmul %0, %1, %cst {dimension_numbers = #tpu.dot_dimension_numbers<[1], [0], [0], [1], [0, 0, 1, 1], [], []>} : vector<8x64xf32>, vector<64x32xf32>, vector<8x32xf32> -> vector<8x32xf32>
    %c0_3 = arith.constant 0 : index
    %c0_4 = arith.constant 0 : index
    %3 = vector.load %arg3[%c0_3, %c0_4] : memref<1x32xf32, #tpu.memory_space<vmem>>, vector<1x32xf32>
    %4 = vector.broadcast %3 : vector<1x32xf32> to vector<8x32xf32>
    %5 = arith.addf %2, %4 : vector<8x32xf32>
    %6 = math.tanh %5 : vector<8x32xf32>
    %c0_5 = arith.constant 0 : index
    %c0_6 = arith.constant 0 : index
    %7 = vector.load %arg4[%c0_5, %c0_6] : memref<32x128xf32, #tpu.memory_space<vmem>>, vector<32x128xf32>
    %cst_7 = arith.constant dense<0.000000e+00> : vector<8x128xf32>
    %8 = tpu.matmul %6, %7, %cst_7 {dimension_numbers = #tpu.dot_dimension_numbers<[1], [0], [0], [1], [0, 0, 1, 1], [], []>} : vector<8x32xf32>, vector<32x128xf32>, vector<8x128xf32> -> vector<8x128xf32>
    %c0_8 = arith.constant 0 : index
    %c0_9 = arith.constant 0 : index
    %9 = vector.load %arg5[%c0_8, %c0_9] : memref<1x128xf32, #tpu.memory_space<vmem>>, vector<1x128xf32>
    %10 = vector.broadcast %9 : vector<1x128xf32> to vector<8x128xf32>
    %11 = arith.addf %8, %10 : vector<8x128xf32>
    %c0_10 = arith.constant 0 : index
    %c0_11 = arith.constant 0 : index
    %12 = vector.load %arg6[%c0_10, %c0_11] : memref<8x128xf32, #tpu.memory_space<vmem>>, vector<8x128xf32>
    tpu.vector_store %arg6[%c0_10, %c0_11], %11 {strides = array<i32>} : memref<8x128xf32, #tpu.memory_space<vmem>>, vector<8x128xf32>,
    return
  }
  func.func @transform_0(%arg0: i32) -> (i32, i32) {
    %c0_i32 = arith.constant 0 : i32
    %c0_i32_0 = arith.constant 0 : i32
    return %arg0, %c0_i32 : i32, i32
  }
  func.func @transform_1(%arg0: i32) -> (i32, i32) {
    %c0_i32 = arith.constant 0 : i32
    %c0_i32_0 = arith.constant 0 : i32
    %c0_i32_1 = arith.constant 0 : i32
    return %c0_i32, %c0_i32_0 : i32, i32
  }
  func.func @transform_2(%arg0: i32) -> (i32, i32) {
    %c0_i32 = arith.constant 0 : i32
    %c0_i32_0 = arith.constant 0 : i32
    %c0_i32_1 = arith.constant 0 : i32
    return %c0_i32, %c0_i32_0 : i32, i32
  }
  func.func @transform_3(%arg0: i32) -> (i32, i32) {
    %c0_i32 = arith.constant 0 : i32
    %c0_i32_0 = arith.constant 0 : i32
    %c0_i32_1 = arith.constant 0 : i32
    return %c0_i32, %c0_i32_0 : i32, i32
  }
  func.func @transform_4(%arg0: i32) -> (i32, i32) {
    %c0_i32 = arith.constant 0 : i32
    %c0_i32_0 = arith.constant 0 : i32
    %c0_i32_1 = arith.constant 0 : i32
    return %c0_i32, %c0_i32_0 : i32, i32
  }
  func.func @transform_5(%arg0: i32) -> (i32, i32) {
    %c0_i32 = arith.constant 0 : i32
    %c0_i32_0 = arith.constant 0 : i32
    return %arg0, %c0_i32 : i32, i32
  }
}

</mosaic_0001>

<llo_original>
// kernel: tpu_custom_call.1
$region0: #{tpu_custom_call.1}
  #allocation0 [shape = 'u32[]', space=smem, size = 0x4, offset = 0x4, fixed_abs, tag = 'smem constant byte address 0x4 - core index']
  #allocation1 [shape = 'u32[144,128]{1,0:T(1,128)}', space=vmem, size = 0x12000, scoped, tag = 'internal scratch']
  %s0 = inlined_call_operand.vmem [shape: f32[4,64], index: 0, kind: input, shape index: {}]
  %s1 = inlined_call_operand.vmem [shape: f32[64,32], index: 1, kind: input, shape index: {}]
  %s2 = inlined_call_operand.vmem [shape: f32[1,32], index: 2, kind: input, shape index: {}]
  %s3 = inlined_call_operand.vmem [shape: f32[32,128], index: 3, kind: input, shape index: {}]
  %s4 = inlined_call_operand.vmem [shape: f32[1,128], index: 4, kind: input, shape index: {}]
  %s5 = inlined_call_operand.hbm [shape: f32[4,128], index: 5, kind: output, shape index: {}]
  %s6 = sld [smem:[#allocation0]]
  $region30: #{tpu_custom_call.1} parent=0
    _
  %s8 = ssub.s32 1, %s6
  %s9 = scalar_select 0, %s8, %s6
  $region1: #{tpu_custom_call.1} parent=0
    #allocation2 [shape = 'u8[4096]{0}', space=vmem, size = 0x1000, scoped, tag = 'output window, operand 0, single buffered']
    #allocation3 [shape = 's32[1]{0}', space=sflag, size = 0x4, scoped, tag = 'scoped memory for tpu_custom_call.1']
    %10 = vsyncpa [#allocation3], 0
    // Predicated region
    $region2: #{tpu_custom_call.1} parent=1 // pred_check
      _
    $region3: #{tpu_custom_call.1} parent=1 // pred_check_branch
      %12 = sbr.rel (0) target = $region5
    $region4: #{tpu_custom_call.1} parent=1 // pred_region
      _
    $region5: #{tpu_custom_call.1} parent=1 // pred_fallthru
      _
    // Predicated region
    $region6: #{tpu_custom_call.1} parent=1 // pred_check
      _
    $region7: #{tpu_custom_call.1} parent=1 // pred_check_branch
      %14 = sbr.rel (0) target = $region9
    $region8: #{tpu_custom_call.1} parent=1 // pred_region
      _
    $region9: #{tpu_custom_call.1} parent=1 // pred_fallthru
      _
    // Predicated region
    $region10: #{tpu_custom_call.1} parent=1 // pred_check
      _
    $region11: #{tpu_custom_call.1} parent=1 // pred_check_branch
      %16 = sbr.rel (0) target = $region13
    $region12: #{tpu_custom_call.1} parent=1 // pred_region
      _
    $region13: #{tpu_custom_call.1} parent=1 // pred_fallthru
      _
    // Predicated region
    $region14: #{tpu_custom_call.1} parent=1 // pred_check
      _
    $region15: #{tpu_custom_call.1} parent=1 // pred_check_branch
      %18 = sbr.rel (0) target = $region17
    $region16: #{tpu_custom_call.1} parent=1 // pred_region
      _
    $region17: #{tpu_custom_call.1} parent=1 // pred_fallthru
      _
    // Predicated region
    $region18: #{tpu_custom_call.1} parent=1 // pred_check
      _
    $region19: #{tpu_custom_call.1} parent=1 // pred_check_branch
      %20 = sbr.rel (0) target = $region21
    $region20: #{tpu_custom_call.1} parent=1 // pred_region
      _
    $region21: #{tpu_custom_call.1} parent=1 // pred_fallthru
      _
    %v21 = vld [vmem:[%s0] sm:$0xff]
    %v22 = vld [vmem:[%s1] sm:$0xff]
    %v23 = vld [vmem:[%s1 + $0x8] sm:$0xff]
    %v24 = vld [vmem:[%s1 + $0x10] sm:$0xff]
    %v25 = vld [vmem:[%s1 + $0x18] sm:$0xff]
    %v26 = vld [vmem:[%s1 + $0x20] sm:$0xff]
    %v27 = vld [vmem:[%s1 + $0x28] sm:$0xff]
    %v28 = vld [vmem:[%s1 + $0x30] sm:$0xff]
    %v29 = vld [vmem:[%s1 + $0x38] sm:$0xff]
    %v30 = vld [vmem:[%s2] sm:$0x1]
    %v32 = vlaneseq
    %v33 = vshrl.u32 %v32, 7
    %v34 = vsub.s32 0, %v33
    %v35 = vrot.slane %v30, %v34
    %vm37 = vcmask 523264
    %v39 = vsel %vm37, %v21, 0
    %41 = vmatprep.subr.mxu0 0.0
    %42 = vmatpush1.msra.mxu0 %v22
    %43 = vmatprep.subr.mxu0 0.0
    %44 = vmatpush1.msra.mxu0 %v23
    %45 = vmatprep.subr.mxu0 0.0
    %46 = vmatpush1.msra.mxu0 %v24
    %47 = vmatprep.subr.mxu0 0.0
    %48 = vmatpush1.msra.mxu0 %v25
    %49 = vmatprep.subr.mxu0 0.0
    %50 = vmatpush1.msra.mxu0 %v26
    %51 = vmatprep.subr.mxu0 0.0
    %52 = vmatpush1.msra.mxu0 %v27
    %53 = vmatprep.subr.mxu0 0.0
    %54 = vmatpush1.msra.mxu0 %v28
    %55 = vmatprep.subr.mxu0 0.0
    %56 = vmatpush1.msra.mxu0 %v29
    %57 = vmatprep.subr.mxu0 0.0
    %58 = vmatpush1.msra.mxu0 0.0
    %59 = vmatprep.subr.mxu0 0.0
    %60 = vmatpush1.msra.mxu0 0.0
    %61 = vmatprep.subr.mxu0 0.0
    %62 = vmatpush1.msra.mxu0 0.0
    %63 = vmatprep.subr.mxu0 0.0
    %64 = vmatpush1.msra.mxu0 0.0
    %65 = vmatprep.subr.mxu0 0.0
    %66 = vmatpush1.msra.mxu0 0.0
    %67 = vmatprep.subr.mxu0 0.0
    %68 = vmatpush1.msra.mxu0 0.0
    %69 = vmatprep.subr.mxu0 0.0
    %70 = vmatpush1.msra.mxu0 0.0
    %71 = vmatprep.subr.mxu0 0.0
    %72 = vmatpush1.msra.mxu0 0.0
    %73 = vmatprep.subr.mxu0 0.0
    %74 = vmatpush1.msra.mxu0 0.0
    %75 = vmatprep.subr.mxu0 0.0
    %76 = vmatpush1.msra.mxu0 0.0
    %77 = vmatprep.subr.mxu0 0.0
    %78 = vmatpush1.msra.mxu0 0.0
    %79 = vmatprep.subr.mxu0 0.0
    %80 = vmatpush1.msra.mxu0 0.0
    %81 = vmatprep.subr.mxu0 0.0
    %82 = vmatpush1.msra.mxu0 0.0
    %83 = vmatprep.subr.mxu0 0.0
    %84 = vmatpush1.msra.mxu0 0.0
    %85 = vmatprep.subr.mxu0 0.0
    %86 = vmatpush1.msra.mxu0 0.0
    %87 = vmatprep.subr.mxu0 0.0
    %88 = vmatpush1.msra.mxu0 0.0
    %89 = vmatprep.subr.mxu0 0.0
    %90 = vmatpush1.msra.mxu0 0.0
    %91 = vmatprep.subr.mxu0 0.0
    %92 = vmatpush1.msra.mxu0 0.0
    %93 = vmatprep.subr.mxu0 0.0
    %94 = vmatpush1.msra.mxu0 0.0
    %95 = vmatprep.subr.mxu0 0.0
    %96 = vmatpush1.msra.mxu0 0.0
    %97 = vmatprep.subr.mxu0 0.0
    %98 = vmatpush1.msra.mxu0 0.0
    %99 = vmatprep.subr.mxu0 0.0
    %100 = vmatpush1.msra.mxu0 0.0
    %101 = vmatprep.subr.mxu0 0.0
    %102 = vmatpush1.msra.mxu0 0.0
    %103 = vmatprep.subr.mxu0 0.0
    %104 = vmatpush1.msra.mxu0 0.0
    %105 = vmatprep.mubr.f32.mxu0 0.0
    %106 = vmatmul.mubr.f32.gmra.mrb[0].mxu0 %v39
    %v107 = vpop.f32.mrb[0].mxu0
    %v108 = vadd.f32 %v35, %v107
    %v109 = vpop.f32.mrb[0].mxu0
    %110 = vdwg.mxu0
    %v111 = vtanh.pop %v108
    %v112 = vld [vmem:[%s3] sm:$0xff]
    %v113 = vld [vmem:[%s3 + $0x8] sm:$0xff]
    %v114 = vld [vmem:[%s3 + $0x10] sm:$0xff]
    %v115 = vld [vmem:[%s3 + $0x18] sm:$0xff]
    %v116 = vld [vmem:[%s4] sm:$0x1]
    %v118 = vlaneseq
    %v119 = vshrl.u32 %v118, 7
    %v120 = vsub.s32 0, %v119
    %v121 = vrot.slane %v116, %v120
    %vm123 = vcmask 261120
    %v125 = vsel %vm123, %v111, 0
    %127 = vmatprep.subr.mxu0 0.0
    %128 = vmatpush1.msra.mxu0 %v112
    %129 = vmatprep.subr.mxu0 0.0
    %130 = vmatpush1.msra.mxu0 %v113
    %131 = vmatprep.subr.mxu0 0.0
    %132 = vmatpush1.msra.mxu0 %v114
    %133 = vmatprep.subr.mxu0 0.0
    %134 = vmatpush1.msra.mxu0 %v115
    %135 = vmatprep.subr.mxu0 0.0
    %136 = vmatpush1.msra.mxu0 0.0
    %137 = vmatprep.subr.mxu0 0.0
    %138 = vmatpush1.msra.mxu0 0.0
    %139 = vmatprep.subr.mxu0 0.0
    %140 = vmatpush1.msra.mxu0 0.0
    %141 = vmatprep.subr.mxu0 0.0
    %142 = vmatpush1.msra.mxu0 0.0
    %143 = vmatprep.subr.mxu0 0.0
    %144 = vmatpush1.msra.mxu0 0.0
    %145 = vmatprep.subr.mxu0 0.0
    %146 = vmatpush1.msra.mxu0 0.0
    %147 = vmatprep.subr.mxu0 0.0
    %148 = vmatpush1.msra.mxu0 0.0
    %149 = vmatprep.subr.mxu0 0.0
    %150 = vmatpush1.msra.mxu0 0.0
    %151 = vmatprep.subr.mxu0 0.0
    %152 = vmatpush1.msra.mxu0 0.0
    %153 = vmatprep.subr.mxu0 0.0
    %154 = vmatpush1.msra.mxu0 0.0
    %155 = vmatprep.subr.mxu0 0.0
    %156 = vmatpush1.msra.mxu0 0.0
    %157 = vmatprep.subr.mxu0 0.0
    %158 = vmatpush1.msra.mxu0 0.0
    %159 = vmatprep.subr.mxu0 0.0
    %160 = vmatpush1.msra.mxu0 0.0
    %161 = vmatprep.subr.mxu0 0.0
    %162 = vmatpush1.msra.mxu0 0.0
    %163 = vmatprep.subr.mxu0 0.0
    %164 = vmatpush1.msra.mxu0 0.0
    %165 = vmatprep.subr.mxu0 0.0
    %166 = vmatpush1.msra.mxu0 0.0
    %167 = vmatprep.subr.mxu0 0.0
    %168 = vmatpush1.msra.mxu0 0.0
    %169 = vmatprep.subr.mxu0 0.0
    %170 = vmatpush1.msra.mxu0 0.0
    %171 = vmatprep.subr.mxu0 0.0
    %172 = vmatpush1.msra.mxu0 0.0
    %173 = vmatprep.subr.mxu0 0.0
    %174 = vmatpush1.msra.mxu0 0.0
    %175 = vmatprep.subr.mxu0 0.0
    %176 = vmatpush1.msra.mxu0 0.0
    %177 = vmatprep.subr.mxu0 0.0
    %178 = vmatpush1.msra.mxu0 0.0
    %179 = vmatprep.subr.mxu0 0.0
    %180 = vmatpush1.msra.mxu0 0.0
    %181 = vmatprep.subr.mxu0 0.0
    %182 = vmatpush1.msra.mxu0 0.0
    %183 = vmatprep.subr.mxu0 0.0
    %184 = vmatpush1.msra.mxu0 0.0
    %185 = vmatprep.subr.mxu0 0.0
    %186 = vmatpush1.msra.mxu0 0.0
    %187 = vmatprep.subr.mxu0 0.0
    %188 = vmatpush1.msra.mxu0 0.0
    %189 = vmatprep.subr.mxu0 0.0
    %190 = vmatpush1.msra.mxu0 0.0
    %191 = vmatprep.mubr.f32.mxu0 0.0
    %192 = vmatmul.mubr.f32.gmra.mrb[0].mxu0 %v125
    %v193 = vpop.f32.mrb[0].mxu0
    %v194 = vadd.f32 %v121, %v193
    %v195 = vpop.f32.mrb[0].mxu0
    %196 = vdwg.mxu0
    %197 = vst [vmem:[#allocation2] sm:$0xff] %v194
    // Predicated region
    $region22: #{tpu_custom_call.1} parent=1 // pred_check
      _
    $region23: #{tpu_custom_call.1} parent=1 // pred_check_branch
      %199 = sbr.rel (0) target = $region25
    $region24: #{tpu_custom_call.1} parent=1 // pred_region
      %s201 = ssub.s32 128, 64
      %202 = vsyncadd [#allocation3], %s201
      %s203 = sshll.u32 [#allocation2], 4
      %s204 = int_to_ptr.vmem [resolvable:$true] %s203
      %209 = dma.vmem_to_hbm [thread:$0]  %s204, 64, %s5, [#allocation3], 64, 64, 4
    $region25: #{tpu_custom_call.1} parent=1 // pred_fallthru
      _
    // Predicated region
    $region26: #{tpu_custom_call.1} parent=1 // pred_check
      _
    $region27: #{tpu_custom_call.1} parent=1 // pred_check_branch
      %211 = sbr.rel (0) target = $region29
    $region28: #{tpu_custom_call.1} parent=1 // pred_region
      %212 = dma.done [#allocation3], 128
    $region29: #{tpu_custom_call.1} parent=1 // pred_fallthru
      _
    %213 = vsyncpa [#allocation3], 1

</llo_original>
